<compile_context>
chip_gen: v7x
topology: tpu7x:2x2x1
jax: 0.10.0
libtpu: 0.0.40
codegen_flags: <defaults>
</compile_context>

<pallas_src>
import jax
import jax.numpy as jnp
import numpy as np
from jax.experimental import pallas as pl
from jax.experimental.pallas import tpu as pltpu

EPS = 1e-5
# 3x3 taps, row-major over (dy, dx); must match the im2col weight layout.
_TAPS = tuple((dy, dx) for dy in (-1, 0, 1) for dx in (-1, 0, 1))


def _make_residual_kernel(N, H, W, C, compute_dtype):
    NHW = N * H * W
    log2w = W.bit_length() - 1  # W is a power of two (asserted in the wrapper)

    def kernel(x_ref, w1_ref, w2_ref, prm_ref, out_ref, slab_ref):
        x = x_ref[...]                              # (C, NHW) f32, lane-dense

        # ---- destination-space halo masks, generated in-kernel (no DMA) ----
        # pos -> (row within image, column within image) via bit tricks.
        pos = jax.lax.broadcasted_iota(jnp.int32, (1, NHW), 1)
        xcol = pos & (W - 1)
        yrow = (pos >> log2w) & (H - 1)

        def tap_mask(dy, dx):
            cond = None
            if dy == -1:
                cond = yrow >= 1
            elif dy == 1:
                cond = yrow <= H - 2
            if dx == -1:
                c = xcol >= 1
                cond = c if cond is None else jnp.logical_and(cond, c)
            elif dx == 1:
                c = xcol <= W - 2
                cond = c if cond is None else jnp.logical_and(cond, c)
            return None if cond is None else jnp.where(cond, 1.0, 0.0)

        # Computed once, reused by both convolutions (center tap -> None).
        masks = [tap_mask(dy, dx) for dy, dx in _TAPS]   # 8 x (1, NHW) f32

        def fill_slab(v):
            """slab[t*C + ci, p] = v[ci, 3x3-neighbour_t(p)], zero-padded 'same'.

            For tap t with flat offset off = dy*W + dx, pltpu.roll brings the
            source pixel p+off to destination position p (circularly); the
            destination-space 0/1 mask zeroes every position whose neighbour
            falls outside the image, which also kills the circular-wrap /
            cross-image garbage. Every store is full-width (NHW lanes, a
            multiple of 128) -> unmasked vst.
            """
            for t, (dy, dx) in enumerate(_TAPS):
                off = dy * W + dx
                rows = slice(t * C, (t + 1) * C)
                vt = v if off == 0 else pltpu.roll(v, (-off) % NHW, axis=1)
                if masks[t] is not None:
                    vt = vt * masks[t]                   # f32 mask multiply
                slab_ref[rows, :] = vt.astype(compute_dtype)

        def bn_scale_shift(y, gamma, beta):
            # Training-mode BN folded to y*scale + shift. y is register-
            # resident, so both reductions traverse the same vregs (no extra
            # VMEM traffic); a stacked [y; y*y] single reduce would need a
            # sublane-offset concatenate that costs as much as it saves at C=4.
            inv_n = 1.0 / NHW
            mean = jnp.sum(y, axis=1, keepdims=True) * inv_n        # (C, 1)
            ex2 = jnp.sum(y * y, axis=1, keepdims=True) * inv_n     # (C, 1)
            var = ex2 - mean * mean
            scale = jax.lax.rsqrt(var + EPS) * gamma
            return scale, beta - mean * scale

        g1, be1 = prm_ref[:, 0:1], prm_ref[:, 1:2]
        g2, be2 = prm_ref[:, 2:3], prm_ref[:, 3:4]

        # conv1 as one K=9*C matmul (conv bias omitted: a per-channel constant
        # is exactly removed by train-mode BN mean subtraction).
        fill_slab(x)
        y1 = jnp.dot(w1_ref[...], slab_ref[...],
                     preferred_element_type=jnp.float32)            # (C, NHW)
        s1, t1 = bn_scale_shift(y1, g1, be1)
        y1 = jnp.maximum(y1 * s1 + t1, 0.0)                         # BN + ReLU

        # conv2 -> BN -> residual add -> ReLU
        fill_slab(y1)
        y2 = jnp.dot(w2_ref[...], slab_ref[...],
                     preferred_element_type=jnp.float32)            # (C, NHW)
        s2, t2 = bn_scale_shift(y2, g2, be2)
        out_ref[...] = jnp.maximum(y2 * s2 + t2 + x, 0.0)

    return kernel


# --------------------------- layout helpers ---------------------------------
def nchw_to_cm(x_nchw):
    """(N, C, H, W) -> channel-major, lane-dense (C, N*H*W). Use ONCE at entry."""
    n, c, h, w = x_nchw.shape
    return jnp.transpose(x_nchw.astype(jnp.float32), (1, 0, 2, 3)).reshape(c, n * h * w)


def cm_to_nchw(x_cm, n, h, w):
    """(C, N*H*W) -> (N, C, H, W). Use ONCE at exit."""
    c = x_cm.shape[0]
    return jnp.transpose(x_cm.reshape(c, n, h, w), (1, 0, 2, 3))


def _w_im2col(w, dtype):
    """OIHW (Co, Ci, 3, 3) -> (Co, 9*Ci), row index (ky*3+kx)*Ci + ci
    (tap-major), matching the slab layout written by fill_slab (_TAPS order)."""
    w = jnp.asarray(w, jnp.float32)
    co, ci = w.shape[0], w.shape[1]
    return jnp.transpose(w, (0, 2, 3, 1)).reshape(co, 9 * ci).astype(dtype)


# --------------------------- block wrappers ----------------------------------
def residual_block_cm(x_cm, params, *, n, h, w, compute_dtype=jnp.bfloat16):
    """One fused residual block in channel-major (C, N*H*W) layout (no layout
    ops). Chain this directly when stacking blocks."""
    c, nhw = x_cm.shape
    assert nhw == n * h * w
    # In-kernel halo-mask generation uses bit tricks -> power-of-two H, W.
    # TODO(synk): for general H/W, pass a small (2, NHW) int32 row/col table
    # instead (still far smaller than the old (9, NHW) f32 mask DMA).
    assert (h & (h - 1)) == 0 and (w & (w - 1)) == 0, "H and W must be powers of two"

    w1 = _w_im2col(params["w1"], compute_dtype)
    w2 = _w_im2col(params["w2"], compute_dtype)
    co = w1.shape[0]
    # All BN affine params in one (C, 4) block: [gamma1, beta1, gamma2, beta2].
    prm = jnp.stack([params["g1"], params["be1"], params["g2"], params["be2"]],
                    axis=1).astype(jnp.float32)

    kernel = _make_residual_kernel(n, h, w, c, compute_dtype)
    vspec = pl.BlockSpec(memory_space=pltpu.MemorySpace.VMEM)

    # Single invocation (no grid): total VMEM use here is ~100 KiB, far below
    # the default scoped limit, so no vmem_limit_bytes override is needed.
    # TODO(synk): for production NHW add a spatial grid (axis marked "parallel"
    # so both v7x TensorCores are used) with a two-pass cross-tile BN stats
    # reduction, and size the NHW tile against v7x's 64 MiB VMEM (the 9*C*tile
    # bf16 slab is the dominant term).
    return pl.pallas_call(
        kernel,
        out_shape=jax.ShapeDtypeStruct((co, nhw), jnp.float32),
        in_specs=[vspec] * 4,
        out_specs=vspec,
        scratch_shapes=[pltpu.VMEM((9 * c, nhw), compute_dtype)],   # im2col slab
    )(x_cm, w1, w2, prm)


def residual_forward(x_nchw, params, compute_dtype=jnp.bfloat16):
    """NCHW convenience wrapper: the NCHW<->channel-major conversion happens
    once at entry/exit. For stacked blocks, convert once and chain
    residual_block_cm to avoid per-block layout round trips."""
    n, c, h, w = x_nchw.shape
    y_cm = residual_block_cm(nchw_to_cm(x_nchw), params, n=n, h=h, w=w,
                             compute_dtype=compute_dtype)
    return cm_to_nchw(y_cm, n, h, w)


# ---------------- pure-JAX reference (for correctness check) ----------------
def residual_ref(x, p):
    def conv(x, w, b):
        y = jax.lax.conv_general_dilated(
            x, w, window_strides=(1, 1), padding="SAME",
            dimension_numbers=("NCHW", "OIHW", "NCHW"),
            precision=jax.lax.Precision.HIGHEST)
        return y + b.reshape(1, -1, 1, 1)

    def bn(y, g, be):
        mean = y.mean(axis=(0, 2, 3), keepdims=True)
        var = ((y - mean) ** 2).mean(axis=(0, 2, 3), keepdims=True)
        return (y - mean) * jax.lax.rsqrt(var + EPS) * g.reshape(1, -1, 1, 1) \
            + be.reshape(1, -1, 1, 1)

    y = jax.nn.relu(bn(conv(x, p["w1"], p["b1"]), p["g1"], p["be1"]))
    y = bn(conv(y, p["w2"], p["b2"]), p["g2"], p["be2"])
    return jax.nn.relu(y + x)


if __name__ == "__main__":
    key = jax.random.PRNGKey(0)
    kx, k1, k2, kb1, kb2 = jax.random.split(key, 5)

    N, C, H, W = 2, 4, 16, 16            # input_channels == num_channels == 4
    x = jax.random.normal(kx, (N, C, H, W), jnp.float32)

    # Deterministic parameter init (shapes per nn.Conv2d / nn.BatchNorm2d)
    params = {
        "w1": 0.1 * jax.random.normal(k1, (C, C, 3, 3), jnp.float32),  # OIHW
        "b1": 0.01 * jax.random.normal(kb1, (C,), jnp.float32),
        "w2": 0.1 * jax.random.normal(k2, (C, C, 3, 3), jnp.float32),  # OIHW
        "b2": 0.01 * jax.random.normal(kb2, (C,), jnp.float32),
        "g1": jnp.ones((C,), jnp.float32),    # bn weight (PyTorch default = 1)
        "be1": jnp.zeros((C,), jnp.float32),  # bn bias   (PyTorch default = 0)
        "g2": jnp.ones((C,), jnp.float32),
        "be2": jnp.zeros((C,), jnp.float32),
    }

    ref = jax.block_until_ready(residual_ref(x, params))

    # 1) exact-semantics check with f32 compute (tight tolerance).
    out_f32 = jax.block_until_ready(
        residual_forward(x, params, compute_dtype=jnp.float32))
    np.testing.assert_allclose(np.asarray(out_f32), np.asarray(ref),
                               rtol=2e-4, atol=2e-4)

    # 2) default bf16 slab/weights (f32 accumulation): ~2^-9 relative rounding
    #    on the conv operands through two convs + BN renormalisation, so a
    #    looser tolerance applies.
    out_bf16 = jax.block_until_ready(residual_forward(x, params))
    np.testing.assert_allclose(np.asarray(out_bf16), np.asarray(ref),
                               rtol=5e-2, atol=5e-2)

    print("KERNEL_OK")
</pallas_src>

<mosaic_0001>
module attributes {stable_mosaic.version = 11 : i64} {
  func.func @kernel(%arg0: memref<4x512xf32, #tpu.memory_space<vmem>>, %arg1: memref<4x36xf32, #tpu.memory_space<vmem>>, %arg2: memref<4x36xf32, #tpu.memory_space<vmem>>, %arg3: memref<4x4xf32, #tpu.memory_space<vmem>>, %arg4: memref<4x512xf32, #tpu.memory_space<vmem>>, %arg5: memref<36x512xf32, #tpu.memory_space<vmem>>) attributes {dimension_semantics = [], scalar_prefetch = 0 : i64, scratch_operands = 1 : i64, tpu.core_type = #tpu.core_type<tc>} {
    %c0 = arith.constant 0 : index
    %c0_0 = arith.constant 0 : index
    %0 = vector.load %arg0[%c0, %c0_0] : memref<4x512xf32, #tpu.memory_space<vmem>>, vector<4x512xf32>
    %1 = tpu.iota {dimensions = array<i32: 1>} : vector<1x512xi32>
    %c15_i32 = arith.constant 15 : i32
    %2 = vector.broadcast %c15_i32 : i32 to vector<1x512xi32>
    %3 = arith.andi %1, %2 : vector<1x512xi32>
    %c4_i32 = arith.constant 4 : i32
    %4 = vector.broadcast %c4_i32 : i32 to vector<1x512xi32>
    %5 = arith.shrsi %1, %4 : vector<1x512xi32>
    %c15_i32_1 = arith.constant 15 : i32
    %6 = vector.broadcast %c15_i32_1 : i32 to vector<1x512xi32>
    %7 = arith.andi %5, %6 : vector<1x512xi32>
    %c1_i32 = arith.constant 1 : i32
    %8 = vector.broadcast %c1_i32 : i32 to vector<1x512xi32>
    %9 = arith.cmpi sge, %7, %8 : vector<1x512xi32>
    %c1_i32_2 = arith.constant 1 : i32
    %10 = vector.broadcast %c1_i32_2 : i32 to vector<1x512xi32>
    %11 = arith.cmpi sge, %3, %10 : vector<1x512xi32>
    %12 = arith.andi %9, %11 : vector<1x512xi1>
    %cst = arith.constant 1.000000e+00 : f32
    %cst_3 = arith.constant 0.000000e+00 : f32
    %13 = vector.broadcast %cst : f32 to vector<1x512xf32>
    %14 = vector.broadcast %cst_3 : f32 to vector<1x512xf32>
    %15 = arith.select %12, %13, %14 : vector<1x512xi1>, vector<1x512xf32>
    %c1_i32_4 = arith.constant 1 : i32
    %16 = vector.broadcast %c1_i32_4 : i32 to vector<1x512xi32>
    %17 = arith.cmpi sge, %7, %16 : vector<1x512xi32>
    %cst_5 = arith.constant 1.000000e+00 : f32
    %cst_6 = arith.constant 0.000000e+00 : f32
    %18 = vector.broadcast %cst_5 : f32 to vector<1x512xf32>
    %19 = vector.broadcast %cst_6 : f32 to vector<1x512xf32>
    %20 = arith.select %17, %18, %19 : vector<1x512xi1>, vector<1x512xf32>
    %c1_i32_7 = arith.constant 1 : i32
    %21 = vector.broadcast %c1_i32_7 : i32 to vector<1x512xi32>
    %22 = arith.cmpi sge, %7, %21 : vector<1x512xi32>
    %c14_i32 = arith.constant 14 : i32
    %23 = vector.broadcast %c14_i32 : i32 to vector<1x512xi32>
    %24 = arith.cmpi sle, %3, %23 : vector<1x512xi32>
    %25 = arith.andi %22, %24 : vector<1x512xi1>
    %cst_8 = arith.constant 1.000000e+00 : f32
    %cst_9 = arith.constant 0.000000e+00 : f32
    %26 = vector.broadcast %cst_8 : f32 to vector<1x512xf32>
    %27 = vector.broadcast %cst_9 : f32 to vector<1x512xf32>
    %28 = arith.select %25, %26, %27 : vector<1x512xi1>, vector<1x512xf32>
    %c1_i32_10 = arith.constant 1 : i32
    %29 = vector.broadcast %c1_i32_10 : i32 to vector<1x512xi32>
    %30 = arith.cmpi sge, %3, %29 : vector<1x512xi32>
    %cst_11 = arith.constant 1.000000e+00 : f32
    %cst_12 = arith.constant 0.000000e+00 : f32
    %31 = vector.broadcast %cst_11 : f32 to vector<1x512xf32>
    %32 = vector.broadcast %cst_12 : f32 to vector<1x512xf32>
    %33 = arith.select %30, %31, %32 : vector<1x512xi1>, vector<1x512xf32>
    %c14_i32_13 = arith.constant 14 : i32
    %34 = vector.broadcast %c14_i32_13 : i32 to vector<1x512xi32>
    %35 = arith.cmpi sle, %3, %34 : vector<1x512xi32>
    %cst_14 = arith.constant 1.000000e+00 : f32
    %cst_15 = arith.constant 0.000000e+00 : f32
    %36 = vector.broadcast %cst_14 : f32 to vector<1x512xf32>
    %37 = vector.broadcast %cst_15 : f32 to vector<1x512xf32>
    %38 = arith.select %35, %36, %37 : vector<1x512xi1>, vector<1x512xf32>
    %c14_i32_16 = arith.constant 14 : i32
    %39 = vector.broadcast %c14_i32_16 : i32 to vector<1x512xi32>
    %40 = arith.cmpi sle, %7, %39 : vector<1x512xi32>
    %c1_i32_17 = arith.constant 1 : i32
    %41 = vector.broadcast %c1_i32_17 : i32 to vector<1x512xi32>
    %42 = arith.cmpi sge, %3, %41 : vector<1x512xi32>
    %43 = arith.andi %40, %42 : vector<1x512xi1>
    %cst_18 = arith.constant 1.000000e+00 : f32
    %cst_19 = arith.constant 0.000000e+00 : f32
    %44 = vector.broadcast %cst_18 : f32 to vector<1x512xf32>
    %45 = vector.broadcast %cst_19 : f32 to vector<1x512xf32>
    %46 = arith.select %43, %44, %45 : vector<1x512xi1>, vector<1x512xf32>
    %c14_i32_20 = arith.constant 14 : i32
    %47 = vector.broadcast %c14_i32_20 : i32 to vector<1x512xi32>
    %48 = arith.cmpi sle, %7, %47 : vector<1x512xi32>
    %cst_21 = arith.constant 1.000000e+00 : f32
    %cst_22 = arith.constant 0.000000e+00 : f32
    %49 = vector.broadcast %cst_21 : f32 to vector<1x512xf32>
    %50 = vector.broadcast %cst_22 : f32 to vector<1x512xf32>
    %51 = arith.select %48, %49, %50 : vector<1x512xi1>, vector<1x512xf32>
    %c14_i32_23 = arith.constant 14 : i32
    %52 = vector.broadcast %c14_i32_23 : i32 to vector<1x512xi32>
    %53 = arith.cmpi sle, %7, %52 : vector<1x512xi32>
    %c14_i32_24 = arith.constant 14 : i32
    %54 = vector.broadcast %c14_i32_24 : i32 to vector<1x512xi32>
    %55 = arith.cmpi sle, %3, %54 : vector<1x512xi32>
    %56 = arith.andi %53, %55 : vector<1x512xi1>
    %cst_25 = arith.constant 1.000000e+00 : f32
    %cst_26 = arith.constant 0.000000e+00 : f32
    %57 = vector.broadcast %cst_25 : f32 to vector<1x512xf32>
    %58 = vector.broadcast %cst_26 : f32 to vector<1x512xf32>
    %59 = arith.select %56, %57, %58 : vector<1x512xi1>, vector<1x512xf32>
    %c0_27 = arith.constant 0 : index
    %c0_28 = arith.constant 0 : index
    %60 = vector.load %arg3[%c0_27, %c0_28] : memref<4x4xf32, #tpu.memory_space<vmem>>, vector<4x1xf32>
    %c0_29 = arith.constant 0 : index
    %c1 = arith.constant 1 : index
    %61 = vector.load %arg3[%c0_29, %c1] : memref<4x4xf32, #tpu.memory_space<vmem>>, vector<4x1xf32>
    %c0_30 = arith.constant 0 : index
    %c2 = arith.constant 2 : index
    %62 = vector.load %arg3[%c0_30, %c2] : memref<4x4xf32, #tpu.memory_space<vmem>>, vector<4x1xf32>
    %c0_31 = arith.constant 0 : index
    %c3 = arith.constant 3 : index
    %63 = vector.load %arg3[%c0_31, %c3] : memref<4x4xf32, #tpu.memory_space<vmem>>, vector<4x1xf32>
    %c17_i32 = arith.constant 17 : i32
    %64 = tpu.dynamic_rotate %0 by %c17_i32 dim 1 : vector<4x512xf32>, i32 -> vector<4x512xf32>
    %65 = vector.broadcast %15 : vector<1x512xf32> to vector<4x512xf32>
    %66 = arith.mulf %64, %65 : vector<4x512xf32>
    %c0_32 = arith.constant 0 : index
    %c0_33 = arith.constant 0 : index
    %67 = vector.load %arg5[%c0_32, %c0_33] : memref<36x512xf32, #tpu.memory_space<vmem>>, vector<4x512xf32>
    tpu.vector_store %arg5[%c0_32, %c0_33], %66 {strides = array<i32>} : memref<36x512xf32, #tpu.memory_space<vmem>>, vector<4x512xf32>,
    %c16_i32 = arith.constant 16 : i32
    %68 = tpu.dynamic_rotate %0 by %c16_i32 dim 1 : vector<4x512xf32>, i32 -> vector<4x512xf32>
    %69 = vector.broadcast %20 : vector<1x512xf32> to vector<4x512xf32>
    %70 = arith.mulf %68, %69 : vector<4x512xf32>
    %c4 = arith.constant 4 : index
    %c0_34 = arith.constant 0 : index
    %71 = vector.load %arg5[%c4, %c0_34] : memref<36x512xf32, #tpu.memory_space<vmem>>, vector<4x512xf32>
    tpu.vector_store %arg5[%c4, %c0_34], %70 {strides = array<i32>} : memref<36x512xf32, #tpu.memory_space<vmem>>, vector<4x512xf32>,
    %c15_i32_35 = arith.constant 15 : i32
    %72 = tpu.dynamic_rotate %0 by %c15_i32_35 dim 1 : vector<4x512xf32>, i32 -> vector<4x512xf32>
    %73 = vector.broadcast %28 : vector<1x512xf32> to vector<4x512xf32>
    %74 = arith.mulf %72, %73 : vector<4x512xf32>
    %c8 = arith.constant 8 : index
    %c0_36 = arith.constant 0 : index
    %75 = vector.load %arg5[%c8, %c0_36] : memref<36x512xf32, #tpu.memory_space<vmem>>, vector<4x512xf32>
    tpu.vector_store %arg5[%c8, %c0_36], %74 {strides = array<i32>} : memref<36x512xf32, #tpu.memory_space<vmem>>, vector<4x512xf32>,
    %c1_i32_37 = arith.constant 1 : i32
    %76 = tpu.dynamic_rotate %0 by %c1_i32_37 dim 1 : vector<4x512xf32>, i32 -> vector<4x512xf32>
    %77 = vector.broadcast %33 : vector<1x512xf32> to vector<4x512xf32>
    %78 = arith.mulf %76, %77 : vector<4x512xf32>
    %c12 = arith.constant 12 : index
    %c0_38 = arith.constant 0 : index
    %79 = vector.load %arg5[%c12, %c0_38] : memref<36x512xf32, #tpu.memory_space<vmem>>, vector<4x512xf32>
    tpu.vector_store %arg5[%c12, %c0_38], %78 {strides = array<i32>} : memref<36x512xf32, #tpu.memory_space<vmem>>, vector<4x512xf32>,
    %c16 = arith.constant 16 : index
    %c0_39 = arith.constant 0 : index
    %80 = vector.load %arg5[%c16, %c0_39] : memref<36x512xf32, #tpu.memory_space<vmem>>, vector<4x512xf32>
    tpu.vector_store %arg5[%c16, %c0_39], %0 {strides = array<i32>} : memref<36x512xf32, #tpu.memory_space<vmem>>, vector<4x512xf32>,
    %c511_i32 = arith.constant 511 : i32
    %81 = tpu.dynamic_rotate %0 by %c511_i32 dim 1 : vector<4x512xf32>, i32 -> vector<4x512xf32>
    %82 = vector.broadcast %38 : vector<1x512xf32> to vector<4x512xf32>
    %83 = arith.mulf %81, %82 : vector<4x512xf32>
    %c20 = arith.constant 20 : index
    %c0_40 = arith.constant 0 : index
    %84 = vector.load %arg5[%c20, %c0_40] : memref<36x512xf32, #tpu.memory_space<vmem>>, vector<4x512xf32>
    tpu.vector_store %arg5[%c20, %c0_40], %83 {strides = array<i32>} : memref<36x512xf32, #tpu.memory_space<vmem>>, vector<4x512xf32>,
    %c497_i32 = arith.constant 497 : i32
    %85 = tpu.dynamic_rotate %0 by %c497_i32 dim 1 : vector<4x512xf32>, i32 -> vector<4x512xf32>
    %86 = vector.broadcast %46 : vector<1x512xf32> to vector<4x512xf32>
    %87 = arith.mulf %85, %86 : vector<4x512xf32>
    %c24 = arith.constant 24 : index
    %c0_41 = arith.constant 0 : index
    %88 = vector.load %arg5[%c24, %c0_41] : memref<36x512xf32, #tpu.memory_space<vmem>>, vector<4x512xf32>
    tpu.vector_store %arg5[%c24, %c0_41], %87 {strides = array<i32>} : memref<36x512xf32, #tpu.memory_space<vmem>>, vector<4x512xf32>,
    %c496_i32 = arith.constant 496 : i32
    %89 = tpu.dynamic_rotate %0 by %c496_i32 dim 1 : vector<4x512xf32>, i32 -> vector<4x512xf32>
    %90 = vector.broadcast %51 : vector<1x512xf32> to vector<4x512xf32>
    %91 = arith.mulf %89, %90 : vector<4x512xf32>
    %c28 = arith.constant 28 : index
    %c0_42 = arith.constant 0 : index
    %92 = vector.load %arg5[%c28, %c0_42] : memref<36x512xf32, #tpu.memory_space<vmem>>, vector<4x512xf32>
    tpu.vector_store %arg5[%c28, %c0_42], %91 {strides = array<i32>} : memref<36x512xf32, #tpu.memory_space<vmem>>, vector<4x512xf32>,
    %c495_i32 = arith.constant 495 : i32
    %93 = tpu.dynamic_rotate %0 by %c495_i32 dim 1 : vector<4x512xf32>, i32 -> vector<4x512xf32>
    %94 = vector.broadcast %59 : vector<1x512xf32> to vector<4x512xf32>
    %95 = arith.mulf %93, %94 : vector<4x512xf32>
    %c32 = arith.constant 32 : index
    %c0_43 = arith.constant 0 : index
    %96 = vector.load %arg5[%c32, %c0_43] : memref<36x512xf32, #tpu.memory_space<vmem>>, vector<4x512xf32>
    tpu.vector_store %arg5[%c32, %c0_43], %95 {strides = array<i32>} : memref<36x512xf32, #tpu.memory_space<vmem>>, vector<4x512xf32>,
    %c0_44 = arith.constant 0 : index
    %c0_45 = arith.constant 0 : index
    %97 = vector.load %arg1[%c0_44, %c0_45] : memref<4x36xf32, #tpu.memory_space<vmem>>, vector<4x36xf32>
    %c0_46 = arith.constant 0 : index
    %c0_47 = arith.constant 0 : index
    %98 = vector.load %arg5[%c0_46, %c0_47] : memref<36x512xf32, #tpu.memory_space<vmem>>, vector<36x512xf32>
    %cst_48 = arith.constant dense<0.000000e+00> : vector<4x512xf32>
    %99 = tpu.matmul %97, %98, %cst_48 {dimension_numbers = #tpu.dot_dimension_numbers<[1], [0], [0], [1], [0, 0, 1, 1], [], []>} : vector<4x36xf32>, vector<36x512xf32>, vector<4x512xf32> -> vector<4x512xf32>
    %cst_49 = arith.constant dense<0.000000e+00> : vector<4xf32>
    %100 = vector.multi_reduction <add>, %99, %cst_49 [1] : vector<4x512xf32> to vector<4xf32>
    %101 = vector.shape_cast %100 : vector<4xf32> to vector<4x1xf32>
    %cst_50 = arith.constant 0.001953125 : f32
    %102 = vector.broadcast %cst_50 : f32 to vector<4x1xf32>
    %103 = arith.mulf %101, %102 : vector<4x1xf32>
    %104 = arith.mulf %99, %99 : vector<4x512xf32>
    %cst_51 = arith.constant dense<0.000000e+00> : vector<4xf32>
    %105 = vector.multi_reduction <add>, %104, %cst_51 [1] : vector<4x512xf32> to vector<4xf32>
    %106 = vector.shape_cast %105 : vector<4xf32> to vector<4x1xf32>
    %cst_52 = arith.constant 0.001953125 : f32
    %107 = vector.broadcast %cst_52 : f32 to vector<4x1xf32>
    %108 = arith.mulf %106, %107 : vector<4x1xf32>
    %109 = arith.mulf %103, %103 : vector<4x1xf32>
    %110 = arith.subf %108, %109 : vector<4x1xf32>
    %cst_53 = arith.constant 9.99999974E-6 : f32
    %111 = vector.broadcast %cst_53 : f32 to vector<4x1xf32>
    %112 = arith.addf %110, %111 : vector<4x1xf32>
    %113 = math.rsqrt %112 : vector<4x1xf32>
    %114 = arith.mulf %113, %60 : vector<4x1xf32>
    %115 = arith.mulf %103, %114 : vector<4x1xf32>
    %116 = arith.subf %61, %115 : vector<4x1xf32>
    %117 = vector.broadcast %114 : vector<4x1xf32> to vector<4x512xf32>
    %118 = arith.mulf %99, %117 : vector<4x512xf32>
    %119 = vector.broadcast %116 : vector<4x1xf32> to vector<4x512xf32>
    %120 = arith.addf %118, %119 : vector<4x512xf32>
    %cst_54 = arith.constant 0.000000e+00 : f32
    %121 = vector.broadcast %cst_54 : f32 to vector<4x512xf32>
    %122 = arith.maximumf %120, %121 : vector<4x512xf32>
    %c17_i32_55 = arith.constant 17 : i32
    %123 = tpu.dynamic_rotate %122 by %c17_i32_55 dim 1 : vector<4x512xf32>, i32 -> vector<4x512xf32>
    %124 = vector.broadcast %15 : vector<1x512xf32> to vector<4x512xf32>
    %125 = arith.mulf %123, %124 : vector<4x512xf32>
    %c0_56 = arith.constant 0 : index
    %c0_57 = arith.constant 0 : index
    %126 = vector.load %arg5[%c0_56, %c0_57] : memref<36x512xf32, #tpu.memory_space<vmem>>, vector<4x512xf32>
    tpu.vector_store %arg5[%c0_56, %c0_57], %125 {strides = array<i32>} : memref<36x512xf32, #tpu.memory_space<vmem>>, vector<4x512xf32>,
    %c16_i32_58 = arith.constant 16 : i32
    %127 = tpu.dynamic_rotate %122 by %c16_i32_58 dim 1 : vector<4x512xf32>, i32 -> vector<4x512xf32>
    %128 = vector.broadcast %20 : vector<1x512xf32> to vector<4x512xf32>
    %129 = arith.mulf %127, %128 : vector<4x512xf32>
    %c4_59 = arith.constant 4 : index
    %c0_60 = arith.constant 0 : index
    %130 = vector.load %arg5[%c4_59, %c0_60] : memref<36x512xf32, #tpu.memory_space<vmem>>, vector<4x512xf32>
    tpu.vector_store %arg5[%c4_59, %c0_60], %129 {strides = array<i32>} : memref<36x512xf32, #tpu.memory_space<vmem>>, vector<4x512xf32>,
    %c15_i32_61 = arith.constant 15 : i32
    %131 = tpu.dynamic_rotate %122 by %c15_i32_61 dim 1 : vector<4x512xf32>, i32 -> vector<4x512xf32>
    %132 = vector.broadcast %28 : vector<1x512xf32> to vector<4x512xf32>
    %133 = arith.mulf %131, %132 : vector<4x512xf32>
    %c8_62 = arith.constant 8 : index
    %c0_63 = arith.constant 0 : index
    %134 = vector.load %arg5[%c8_62, %c0_63] : memref<36x512xf32, #tpu.memory_space<vmem>>, vector<4x512xf32>
    tpu.vector_store %arg5[%c8_62, %c0_63], %133 {strides = array<i32>} : memref<36x512xf32, #tpu.memory_space<vmem>>, vector<4x512xf32>,
    %c1_i32_64 = arith.constant 1 : i32
    %135 = tpu.dynamic_rotate %122 by %c1_i32_64 dim 1 : vector<4x512xf32>, i32 -> vector<4x512xf32>
    %136 = vector.broadcast %33 : vector<1x512xf32> to vector<4x512xf32>
    %137 = arith.mulf %135, %136 : vector<4x512xf32>
    %c12_65 = arith.constant 12 : index
    %c0_66 = arith.constant 0 : index
    %138 = vector.load %arg5[%c12_65, %c0_66] : memref<36x512xf32, #tpu.memory_space<vmem>>, vector<4x512xf32>
    tpu.vector_store %arg5[%c12_65, %c0_66], %137 {strides = array<i32>} : memref<36x512xf32, #tpu.memory_space<vmem>>, vector<4x512xf32>,
    %c16_67 = arith.constant 16 : index
    %c0_68 = arith.constant 0 : index
    %139 = vector.load %arg5[%c16_67, %c0_68] : memref<36x512xf32, #tpu.memory_space<vmem>>, vector<4x512xf32>
    tpu.vector_store %arg5[%c16_67, %c0_68], %122 {strides = array<i32>} : memref<36x512xf32, #tpu.memory_space<vmem>>, vector<4x512xf32>,
    %c511_i32_69 = arith.constant 511 : i32
    %140 = tpu.dynamic_rotate %122 by %c511_i32_69 dim 1 : vector<4x512xf32>, i32 -> vector<4x512xf32>
    %141 = vector.broadcast %38 : vector<1x512xf32> to vector<4x512xf32>
    %142 = arith.mulf %140, %141 : vector<4x512xf32>
    %c20_70 = arith.constant 20 : index
    %c0_71 = arith.constant 0 : index
    %143 = vector.load %arg5[%c20_70, %c0_71] : memref<36x512xf32, #tpu.memory_space<vmem>>, vector<4x512xf32>
    tpu.vector_store %arg5[%c20_70, %c0_71], %142 {strides = array<i32>} : memref<36x512xf32, #tpu.memory_space<vmem>>, vector<4x512xf32>,
    %c497_i32_72 = arith.constant 497 : i32
    %144 = tpu.dynamic_rotate %122 by %c497_i32_72 dim 1 : vector<4x512xf32>, i32 -> vector<4x512xf32>
    %145 = vector.broadcast %46 : vector<1x512xf32> to vector<4x512xf32>
    %146 = arith.mulf %144, %145 : vector<4x512xf32>
    %c24_73 = arith.constant 24 : index
    %c0_74 = arith.constant 0 : index
    %147 = vector.load %arg5[%c24_73, %c0_74] : memref<36x512xf32, #tpu.memory_space<vmem>>, vector<4x512xf32>
    tpu.vector_store %arg5[%c24_73, %c0_74], %146 {strides = array<i32>} : memref<36x512xf32, #tpu.memory_space<vmem>>, vector<4x512xf32>,
    %c496_i32_75 = arith.constant 496 : i32
    %148 = tpu.dynamic_rotate %122 by %c496_i32_75 dim 1 : vector<4x512xf32>, i32 -> vector<4x512xf32>
    %149 = vector.broadcast %51 : vector<1x512xf32> to vector<4x512xf32>
    %150 = arith.mulf %148, %149 : vector<4x512xf32>
    %c28_76 = arith.constant 28 : index
    %c0_77 = arith.constant 0 : index
    %151 = vector.load %arg5[%c28_76, %c0_77] : memref<36x512xf32, #tpu.memory_space<vmem>>, vector<4x512xf32>
    tpu.vector_store %arg5[%c28_76, %c0_77], %150 {strides = array<i32>} : memref<36x512xf32, #tpu.memory_space<vmem>>, vector<4x512xf32>,
    %c495_i32_78 = arith.constant 495 : i32
    %152 = tpu.dynamic_rotate %122 by %c495_i32_78 dim 1 : vector<4x512xf32>, i32 -> vector<4x512xf32>
    %153 = vector.broadcast %59 : vector<1x512xf32> to vector<4x512xf32>
    %154 = arith.mulf %152, %153 : vector<4x512xf32>
    %c32_79 = arith.constant 32 : index
    %c0_80 = arith.constant 0 : index
    %155 = vector.load %arg5[%c32_79, %c0_80] : memref<36x512xf32, #tpu.memory_space<vmem>>, vector<4x512xf32>
    tpu.vector_store %arg5[%c32_79, %c0_80], %154 {strides = array<i32>} : memref<36x512xf32, #tpu.memory_space<vmem>>, vector<4x512xf32>,
    %c0_81 = arith.constant 0 : index
    %c0_82 = arith.constant 0 : index
    %156 = vector.load %arg2[%c0_81, %c0_82] : memref<4x36xf32, #tpu.memory_space<vmem>>, vector<4x36xf32>
    %c0_83 = arith.constant 0 : index
    %c0_84 = arith.constant 0 : index
    %157 = vector.load %arg5[%c0_83, %c0_84] : memref<36x512xf32, #tpu.memory_space<vmem>>, vector<36x512xf32>
    %cst_85 = arith.constant dense<0.000000e+00> : vector<4x512xf32>
    %158 = tpu.matmul %156, %157, %cst_85 {dimension_numbers = #tpu.dot_dimension_numbers<[1], [0], [0], [1], [0, 0, 1, 1], [], []>} : vector<4x36xf32>, vector<36x512xf32>, vector<4x512xf32> -> vector<4x512xf32>
    %cst_86 = arith.constant dense<0.000000e+00> : vector<4xf32>
    %159 = vector.multi_reduction <add>, %158, %cst_86 [1] : vector<4x512xf32> to vector<4xf32>
    %160 = vector.shape_cast %159 : vector<4xf32> to vector<4x1xf32>
    %cst_87 = arith.constant 0.001953125 : f32
    %161 = vector.broadcast %cst_87 : f32 to vector<4x1xf32>
    %162 = arith.mulf %160, %161 : vector<4x1xf32>
    %163 = arith.mulf %158, %158 : vector<4x512xf32>
    %cst_88 = arith.constant dense<0.000000e+00> : vector<4xf32>
    %164 = vector.multi_reduction <add>, %163, %cst_88 [1] : vector<4x512xf32> to vector<4xf32>
    %165 = vector.shape_cast %164 : vector<4xf32> to vector<4x1xf32>
    %cst_89 = arith.constant 0.001953125 : f32
    %166 = vector.broadcast %cst_89 : f32 to vector<4x1xf32>
    %167 = arith.mulf %165, %166 : vector<4x1xf32>
    %168 = arith.mulf %162, %162 : vector<4x1xf32>
    %169 = arith.subf %167, %168 : vector<4x1xf32>
    %cst_90 = arith.constant 9.99999974E-6 : f32
    %170 = vector.broadcast %cst_90 : f32 to vector<4x1xf32>
    %171 = arith.addf %169, %170 : vector<4x1xf32>
    %172 = math.rsqrt %171 : vector<4x1xf32>
    %173 = arith.mulf %172, %62 : vector<4x1xf32>
    %174 = arith.mulf %162, %173 : vector<4x1xf32>
    %175 = arith.subf %63, %174 : vector<4x1xf32>
    %176 = vector.broadcast %173 : vector<4x1xf32> to vector<4x512xf32>
    %177 = arith.mulf %158, %176 : vector<4x512xf32>
    %178 = vector.broadcast %175 : vector<4x1xf32> to vector<4x512xf32>
    %179 = arith.addf %177, %178 : vector<4x512xf32>
    %180 = arith.addf %179, %0 : vector<4x512xf32>
    %cst_91 = arith.constant 0.000000e+00 : f32
    %181 = vector.broadcast %cst_91 : f32 to vector<4x512xf32>
    %182 = arith.maximumf %180, %181 : vector<4x512xf32>
    %c0_92 = arith.constant 0 : index
    %c0_93 = arith.constant 0 : index
    %183 = vector.load %arg4[%c0_92, %c0_93] : memref<4x512xf32, #tpu.memory_space<vmem>>, vector<4x512xf32>
    tpu.vector_store %arg4[%c0_92, %c0_93], %182 {strides = array<i32>} : memref<4x512xf32, #tpu.memory_space<vmem>>, vector<4x512xf32>,
    return
  }
}

</mosaic_0001>

<llo_original>
// kernel: tpu_custom_call.1
$region0: #{tpu_custom_call.1}
  #allocation0 [shape = 'u32[]', space=smem, size = 0x4, offset = 0x4, fixed_abs, tag = 'smem constant byte address 0x4 - core index']
  #allocation1 [shape = 'u32[144,128]{1,0:T(1,128)}', space=vmem, size = 0x12000, scoped, tag = 'internal scratch']
  #allocation2 [shape = 'f32[36,512]{1,0:T(8,128)}', space=vmem, size = 0x14000, scoped, tag = 'scratch operand']
  %s0 = inlined_call_operand.hbm [shape: f32[4,512], index: 0, kind: input, shape index: {}]
  %s1 = inlined_call_operand.hbm [shape: f32[4,36], index: 1, kind: input, shape index: {}]
  %s2 = inlined_call_operand.vmem [shape: f32[4,36], index: 2, kind: input, shape index: {}]
  %s3 = inlined_call_operand.vmem [shape: f32[4,4], index: 3, kind: input, shape index: {}]
  %s4 = inlined_call_operand.hbm [shape: f32[4,512], index: 4, kind: output, shape index: {}]
  %s5 = sld [smem:[#allocation0]]
  $region34: #{tpu_custom_call.1} parent=0
    _
  %s7 = ssub.s32 1, %s5
  %s8 = scalar_select 0, %s7, %s5
  $region1: #{tpu_custom_call.1} parent=0
    #allocation3 [shape = 'u8[8192]{0}', space=vmem, size = 0x2000, scoped, tag = 'input window, operand 0, single buffered']
    #allocation4 [shape = 's32[1]{0}', space=sflag, size = 0x4, scoped, tag = 'scoped memory for tpu_custom_call.1']
    #allocation5 [shape = 's32[1]{0}', space=sflag, size = 0x4, scoped, tag = 'scoped memory for tpu_custom_call.1']
    #allocation6 [shape = 'u8[2048]{0}', space=vmem, size = 0x800, scoped, tag = 'input window, operand 1, single buffered']
    #allocation7 [shape = 's32[1]{0}', space=sflag, size = 0x4, scoped, tag = 'scoped memory for tpu_custom_call.1']
    #allocation8 [shape = 'u8[8192]{0}', space=vmem, size = 0x2000, scoped, tag = 'output window, operand 0, single buffered']
    %9 = vsyncpa [#allocation4], 0
    %10 = vsyncpa [#allocation7], 0
    %11 = vsyncpa [#allocation5], 0
    // Predicated region
    $region2: #{tpu_custom_call.1} parent=1 // pred_check
      _
    $region3: #{tpu_custom_call.1} parent=1 // pred_check_branch
      %13 = sbr.rel (0) target = $region5
    $region4: #{tpu_custom_call.1} parent=1 // pred_region
      %s15 = ssub.s32 256, 256
      %16 = vsyncadd [#allocation4], %s15
      %s18 = sshll.u32 [#allocation3], 4
      %s19 = int_to_ptr.vmem [resolvable:$true] %s18
      %21 = dma.hbm_to_vmem [thread:$0]  %s0, 256, %s19, [#allocation4]
    $region5: #{tpu_custom_call.1} parent=1 // pred_fallthru
      _
    // Predicated region
    $region6: #{tpu_custom_call.1} parent=1 // pred_check
      _
    $region7: #{tpu_custom_call.1} parent=1 // pred_check_branch
      %23 = sbr.rel (0) target = $region9
    $region8: #{tpu_custom_call.1} parent=1 // pred_region
      %s25 = ssub.s32 64, 64
      %26 = vsyncadd [#allocation7], %s25
      %s28 = sshll.u32 [#allocation6], 4
      %s29 = int_to_ptr.vmem [resolvable:$true] %s28
      %31 = dma.hbm_to_vmem [thread:$0]  %s1, 64, %s29, [#allocation7]
    $region9: #{tpu_custom_call.1} parent=1 // pred_fallthru
      _
    // Predicated region
    $region10: #{tpu_custom_call.1} parent=1 // pred_check
      _
    $region11: #{tpu_custom_call.1} parent=1 // pred_check_branch
      %33 = sbr.rel (0) target = $region13
    $region12: #{tpu_custom_call.1} parent=1 // pred_region
      _
    $region13: #{tpu_custom_call.1} parent=1 // pred_fallthru
      _
    // Predicated region
    $region14: #{tpu_custom_call.1} parent=1 // pred_check
      _
    $region15: #{tpu_custom_call.1} parent=1 // pred_check_branch
      %35 = sbr.rel (0) target = $region17
    $region16: #{tpu_custom_call.1} parent=1 // pred_region
      _
    $region17: #{tpu_custom_call.1} parent=1 // pred_fallthru
      _
    // Predicated region
    $region18: #{tpu_custom_call.1} parent=1 // pred_check
      _
    $region19: #{tpu_custom_call.1} parent=1 // pred_check_branch
      %37 = sbr.rel (0) target = $region21
    $region20: #{tpu_custom_call.1} parent=1 // pred_region
      %38 = dma.done [#allocation4], 256
    $region21: #{tpu_custom_call.1} parent=1 // pred_fallthru
      _
    // Predicated region
    $region22: #{tpu_custom_call.1} parent=1 // pred_check
      _
    $region23: #{tpu_custom_call.1} parent=1 // pred_check_branch
      %40 = sbr.rel (0) target = $region25
    $region24: #{tpu_custom_call.1} parent=1 // pred_region
      %41 = dma.done [#allocation7], 64
    $region25: #{tpu_custom_call.1} parent=1 // pred_fallthru
      _
    %v42 = vld [vmem:[#allocation3] sm:$0xff]
    %v43 = vld [vmem:[#allocation3 + $0x8] sm:$0xff]
    %v44 = vlaneseq
    %v45 = vand.u32 %v44, 127
    %v46 = vadd.s32 %v45, 128
    %v47 = vadd.s32 %v45, 256
    %v48 = vadd.s32 %v45, 384
    %v49 = vand.u32 %v45, 15
    %v50 = vand.u32 %v46, 15
    %v51 = vand.u32 %v47, 15
    %v52 = vand.u32 %v48, 15
    %v53 = vshra.s32 %v45, 4
    %v54 = vshra.s32 %v46, 4
    %v55 = vshra.s32 %v47, 4
    %v56 = vshra.s32 %v48, 4
    %v57 = vand.u32 %v53, 15
    %v58 = vand.u32 %v54, 15
    %v59 = vand.u32 %v55, 15
    %v60 = vand.u32 %v56, 15
    %vm61 = vcmp.ge.s32.totalorder %v57, 1
    %vm62 = vcmp.ge.s32.totalorder %v58, 1
    %vm63 = vcmp.ge.s32.totalorder %v59, 1
    %vm64 = vcmp.ge.s32.totalorder %v60, 1
    %vm65 = vcmp.ge.s32.totalorder %v49, 1
    %vm66 = vcmp.ge.s32.totalorder %v50, 1
    %vm67 = vcmp.ge.s32.totalorder %v51, 1
    %vm68 = vcmp.ge.s32.totalorder %v52, 1
    %vm69 = vmand %vm61, %vm65
    %vm70 = vmand %vm62, %vm66
    %vm71 = vmand %vm63, %vm67
    %vm72 = vmand %vm64, %vm68
    %v73 = vsel %vm69, 1.0, 0.0
    %v74 = vsel %vm70, 1.0, 0.0
    %v75 = vsel %vm71, 1.0, 0.0
    %v76 = vsel %vm72, 1.0, 0.0
    %v77 = vsel %vm61, 1.0, 0.0
    %v78 = vsel %vm62, 1.0, 0.0
    %v79 = vsel %vm63, 1.0, 0.0
    %v80 = vsel %vm64, 1.0, 0.0
    %vm81 = vcmp.le.s32.totalorder %v49, 14
    %vm82 = vcmp.le.s32.totalorder %v50, 14
    %vm83 = vcmp.le.s32.totalorder %v51, 14
    %vm84 = vcmp.le.s32.totalorder %v52, 14
    %vm85 = vmand %vm61, %vm81
    %vm86 = vmand %vm62, %vm82
    %vm87 = vmand %vm63, %vm83
    %vm88 = vmand %vm64, %vm84
    %v89 = vsel %vm85, 1.0, 0.0
    %v90 = vsel %vm86, 1.0, 0.0
    %v91 = vsel %vm87, 1.0, 0.0
    %v92 = vsel %vm88, 1.0, 0.0
    %v93 = vsel %vm65, 1.0, 0.0
    %v94 = vsel %vm66, 1.0, 0.0
    %v95 = vsel %vm67, 1.0, 0.0
    %v96 = vsel %vm68, 1.0, 0.0
    %v97 = vsel %vm81, 1.0, 0.0
    %v98 = vsel %vm82, 1.0, 0.0
    %v99 = vsel %vm83, 1.0, 0.0
    %v100 = vsel %vm84, 1.0, 0.0
    %vm101 = vcmp.le.s32.totalorder %v57, 14
    %vm102 = vcmp.le.s32.totalorder %v58, 14
    %vm103 = vcmp.le.s32.totalorder %v59, 14
    %vm104 = vcmp.le.s32.totalorder %v60, 14
    %vm105 = vmand %vm101, %vm65
    %vm106 = vmand %vm102, %vm66
    %vm107 = vmand %vm103, %vm67
    %vm108 = vmand %vm104, %vm68
    %v109 = vsel %vm105, 1.0, 0.0
    %v110 = vsel %vm106, 1.0, 0.0
    %v111 = vsel %vm107, 1.0, 0.0
    %v112 = vsel %vm108, 1.0, 0.0
    %v113 = vsel %vm101, 1.0, 0.0
    %v114 = vsel %vm102, 1.0, 0.0
    %v115 = vsel %vm103, 1.0, 0.0
    %v116 = vsel %vm104, 1.0, 0.0
    %vm117 = vmand %vm101, %vm81
    %vm118 = vmand %vm102, %vm82
    %vm119 = vmand %vm103, %vm83
    %vm120 = vmand %vm104, %vm84
    %v121 = vsel %vm117, 1.0, 0.0
    %v122 = vsel %vm118, 1.0, 0.0
    %v123 = vsel %vm119, 1.0, 0.0
    %v124 = vsel %vm120, 1.0, 0.0
    %v125 = vld [vmem:[%s3] sm:$0xf]
    %v128 = vcombine.high %v42, %v42
    %v129 = vcombine.high %v43, %v43
    %132 = vrot.lane.b32.xlu0 %v42, 17
    %v133 = vpop.permute.xlu0 %132
    %134 = vrot.lane.b32.xlu0 %v128, 17
    %v135 = vpop.permute.xlu0 %134
    %136 = vrot.lane.b32.xlu0 %v43, 17
    %v137 = vpop.permute.xlu0 %136
    %138 = vrot.lane.b32.xlu0 %v129, 17
    %v139 = vpop.permute.xlu0 %138
    %vm140 = vcmp.lt.s32.totalorder %v45, 17
    %v141 = vsel %vm140, %v137, %v139
    %v142 = vsel %vm140, %v135, %v137
    %v143 = vsel %vm140, %v133, %v135
    %v144 = vsel %vm140, %v139, %v133
    %v145 = vmul.f32 %v144, %v73
    %v146 = vmul.f32 %v143, %v74
    %v147 = vmul.f32 %v142, %v75
    %v148 = vmul.f32 %v141, %v76
    %149 = vst [vmem:[#allocation2] sm:$0xf] %v145
    %150 = vst [vmem:[#allocation2 + $0x8] sm:$0xf] %v146
    %151 = vst [vmem:[#allocation2 + $0x10] sm:$0xf] %v147
    %152 = vst [vmem:[#allocation2 + $0x18] sm:$0xf] %v148
    %153 = vrot.lane.b32.xlu0 %v42, 16
    %v154 = vpop.permute.xlu0 %153
    %155 = vrot.lane.b32.xlu0 %v128, 16
    %v156 = vpop.permute.xlu0 %155
    %157 = vrot.lane.b32.xlu0 %v43, 16
    %v158 = vpop.permute.xlu0 %157
    %159 = vrot.lane.b32.xlu0 %v129, 16
    %v160 = vpop.permute.xlu0 %159
    %vm161 = vcmp.lt.s32.totalorder %v45, 16
    %v162 = vsel %vm161, %v158, %v160
    %v163 = vsel %vm161, %v156, %v158
    %v164 = vsel %vm161, %v154, %v156
    %v165 = vsel %vm161, %v160, %v154
    %v166 = vmul.f32 %v165, %v77
    %v167 = vmul.f32 %v164, %v78
    %v168 = vmul.f32 %v163, %v79
    %v169 = vmul.f32 %v162, %v80
    %v174 = vrot.slane %v166, 4
    %v175 = vrot.slane %v167, 4
    %v176 = vrot.slane %v168, 4
    %v177 = vrot.slane %v169, 4
    %182 = vst [vmem:[#allocation2] sm:$0xf0] %v174
    %183 = vst [vmem:[#allocation2 + $0x8] sm:$0xf0] %v175
    %184 = vst [vmem:[#allocation2 + $0x10] sm:$0xf0] %v176
    %185 = vst [vmem:[#allocation2 + $0x18] sm:$0xf0] %v177
    %186 = vrot.lane.b32.xlu0 %v42, 15
    %v187 = vpop.permute.xlu0 %186
    %188 = vrot.lane.b32.xlu0 %v128, 15
    %v189 = vpop.permute.xlu0 %188
    %190 = vrot.lane.b32.xlu0 %v43, 15
    %v191 = vpop.permute.xlu0 %190
    %192 = vrot.lane.b32.xlu0 %v129, 15
    %v193 = vpop.permute.xlu0 %192
    %vm194 = vcmp.lt.s32.totalorder %v45, 15
    %v195 = vsel %vm194, %v191, %v193
    %v196 = vsel %vm194, %v189, %v191
    %v197 = vsel %vm194, %v187, %v189
    %v198 = vsel %vm194, %v193, %v187
    %v199 = vmul.f32 %v198, %v89
    %v200 = vmul.f32 %v197, %v90
    %v201 = vmul.f32 %v196, %v91
    %v202 = vmul.f32 %v195, %v92
    %203 = vst [vmem:[#allocation2 + $0x20] sm:$0xf] %v199
    %204 = vst [vmem:[#allocation2 + $0x28] sm:$0xf] %v200
    %205 = vst [vmem:[#allocation2 + $0x30] sm:$0xf] %v201
    %206 = vst [vmem:[#allocation2 + $0x38] sm:$0xf] %v202
    %207 = vrot.lane.b32.xlu0 %v42, 1
    %v208 = vpop.permute.xlu0 %207
    %209 = vrot.lane.b32.xlu0 %v128, 1
    %v210 = vpop.permute.xlu0 %209
    %211 = vrot.lane.b32.xlu0 %v43, 1
    %v212 = vpop.permute.xlu0 %211
    %213 = vrot.lane.b32.xlu0 %v129, 1
    %v214 = vpop.permute.xlu0 %213
    %vm215 = vcmp.lt.s32.totalorder %v45, 1
    %v216 = vsel %vm215, %v212, %v214
    %v217 = vsel %vm215, %v210, %v212
    %v218 = vsel %vm215, %v208, %v210
    %v219 = vsel %vm215, %v214, %v208
    %v220 = vmul.f32 %v219, %v93
    %v221 = vmul.f32 %v218, %v94
    %v222 = vmul.f32 %v217, %v95
    %v223 = vmul.f32 %v216, %v96
    %v228 = vrot.slane %v220, 4
    %v229 = vrot.slane %v221, 4
    %v230 = vrot.slane %v222, 4
    %v231 = vrot.slane %v223, 4
    %236 = vst [vmem:[#allocation2 + $0x20] sm:$0xf0] %v228
    %237 = vst [vmem:[#allocation2 + $0x28] sm:$0xf0] %v229
    %238 = vst [vmem:[#allocation2 + $0x30] sm:$0xf0] %v230
    %239 = vst [vmem:[#allocation2 + $0x38] sm:$0xf0] %v231
    %240 = vst [vmem:[#allocation2 + $0x40] sm:$0xf] %v42
    %241 = vst [vmem:[#allocation2 + $0x48] sm:$0xf] %v128
    %242 = vst [vmem:[#allocation2 + $0x50] sm:$0xf] %v43
    %243 = vst [vmem:[#allocation2 + $0x58] sm:$0xf] %v129
    %244 = vrot.lane.b32.xlu0 %v42, 127
    %v245 = vpop.permute.xlu0 %244
    %246 = vrot.lane.b32.xlu0 %v128, 127
    %v247 = vpop.permute.xlu0 %246
    %248 = vrot.lane.b32.xlu0 %v43, 127
    %v249 = vpop.permute.xlu0 %248
    %250 = vrot.lane.b32.xlu0 %v129, 127
    %v251 = vpop.permute.xlu0 %250
    %vm252 = vcmp.lt.s32.totalorder %v45, 127
    %v253 = vsel %vm252, %v249, %v251
    %v254 = vsel %vm252, %v247, %v249
    %v255 = vsel %vm252, %v245, %v247
    %v256 = vsel %vm252, %v251, %v245
    %v257 = vmul.f32 %v255, %v97
    %v258 = vmul.f32 %v254, %v98
    %v259 = vmul.f32 %v253, %v99
    %v260 = vmul.f32 %v256, %v100
    %v265 = vrot.slane %v257, 4
    %v266 = vrot.slane %v258, 4
    %v267 = vrot.slane %v259, 4
    %v268 = vrot.slane %v260, 4
    %273 = vst [vmem:[#allocation2 + $0x40] sm:$0xf0] %v265
    %274 = vst [vmem:[#allocation2 + $0x48] sm:$0xf0] %v266
    %275 = vst [vmem:[#allocation2 + $0x50] sm:$0xf0] %v267
    %276 = vst [vmem:[#allocation2 + $0x58] sm:$0xf0] %v268
    %277 = vrot.lane.b32.xlu0 %v42, 113
    %v278 = vpop.permute.xlu0 %277
    %279 = vrot.lane.b32.xlu0 %v128, 113
    %v280 = vpop.permute.xlu0 %279
    %281 = vrot.lane.b32.xlu0 %v43, 113
    %v282 = vpop.permute.xlu0 %281
    %283 = vrot.lane.b32.xlu0 %v129, 113
    %v284 = vpop.permute.xlu0 %283
    %vm285 = vcmp.lt.s32.totalorder %v45, 113
    %v286 = vsel %vm285, %v282, %v284
    %v287 = vsel %vm285, %v280, %v282
    %v288 = vsel %vm285, %v278, %v280
    %v289 = vsel %vm285, %v284, %v278
    %v290 = vmul.f32 %v288, %v109
    %v291 = vmul.f32 %v287, %v110
    %v292 = vmul.f32 %v286, %v111
    %v293 = vmul.f32 %v289, %v112
    %294 = vst [vmem:[#allocation2 + $0x60] sm:$0xf] %v290
    %295 = vst [vmem:[#allocation2 + $0x68] sm:$0xf] %v291
    %296 = vst [vmem:[#allocation2 + $0x70] sm:$0xf] %v292
    %297 = vst [vmem:[#allocation2 + $0x78] sm:$0xf] %v293
    %298 = vrot.lane.b32.xlu0 %v42, 112
    %v299 = vpop.permute.xlu0 %298
    %300 = vrot.lane.b32.xlu0 %v128, 112
    %v301 = vpop.permute.xlu0 %300
    %302 = vrot.lane.b32.xlu0 %v43, 112
    %v303 = vpop.permute.xlu0 %302
    %304 = vrot.lane.b32.xlu0 %v129, 112
    %v305 = vpop.permute.xlu0 %304
    %vm306 = vcmp.lt.s32.totalorder %v45, 112
    %v307 = vsel %vm306, %v303, %v305
    %v308 = vsel %vm306, %v301, %v303
    %v309 = vsel %vm306, %v299, %v301
    %v310 = vsel %vm306, %v305, %v299
    %v311 = vmul.f32 %v309, %v113
    %v312 = vmul.f32 %v308, %v114
    %v313 = vmul.f32 %v307, %v115
    %v314 = vmul.f32 %v310, %v116
    %v319 = vrot.slane %v311, 4
    %v320 = vrot.slane %v312, 4
    %v321 = vrot.slane %v313, 4
    %v322 = vrot.slane %v314, 4
    %327 = vst [vmem:[#allocation2 + $0x60] sm:$0xf0] %v319
    %328 = vst [vmem:[#allocation2 + $0x68] sm:$0xf0] %v320
    %329 = vst [vmem:[#allocation2 + $0x70] sm:$0xf0] %v321
    %330 = vst [vmem:[#allocation2 + $0x78] sm:$0xf0] %v322
    %331 = vrot.lane.b32.xlu0 %v42, 111
    %v332 = vpop.permute.xlu0 %331
    %333 = vrot.lane.b32.xlu0 %v128, 111
    %v334 = vpop.permute.xlu0 %333
    %335 = vrot.lane.b32.xlu0 %v43, 111
    %v336 = vpop.permute.xlu0 %335
    %337 = vrot.lane.b32.xlu0 %v129, 111
    %v338 = vpop.permute.xlu0 %337
    %vm339 = vcmp.lt.s32.totalorder %v45, 111
    %v340 = vsel %vm339, %v336, %v338
    %v341 = vsel %vm339, %v334, %v336
    %v342 = vsel %vm339, %v332, %v334
    %v343 = vsel %vm339, %v338, %v332
    %v344 = vmul.f32 %v342, %v121
    %v345 = vmul.f32 %v341, %v122
    %v346 = vmul.f32 %v340, %v123
    %v347 = vmul.f32 %v343, %v124
    %348 = vst [vmem:[#allocation2 + $0x80] sm:$0xf] %v344
    %349 = vst [vmem:[#allocation2 + $0x88] sm:$0xf] %v345
    %350 = vst [vmem:[#allocation2 + $0x90] sm:$0xf] %v346
    %351 = vst [vmem:[#allocation2 + $0x98] sm:$0xf] %v347
    %v352 = vld [vmem:[#allocation6] sm:$0xf]
    %v353 = vld [vmem:[#allocation2] sm:$0xff]
    %v354 = vld [vmem:[#allocation2 + $0x8] sm:$0xff]
    %v355 = vld [vmem:[#allocation2 + $0x10] sm:$0xff]
    %v356 = vld [vmem:[#allocation2 + $0x18] sm:$0xff]
    %v357 = vld [vmem:[#allocation2 + $0x20] sm:$0xff]
    %v358 = vld [vmem:[#allocation2 + $0x28] sm:$0xff]
    %v359 = vld [vmem:[#allocation2 + $0x30] sm:$0xff]
    %v360 = vld [vmem:[#allocation2 + $0x38] sm:$0xff]
    %v361 = vld [vmem:[#allocation2 + $0x40] sm:$0xff]
    %v362 = vld [vmem:[#allocation2 + $0x48] sm:$0xff]
    %v363 = vld [vmem:[#allocation2 + $0x50] sm:$0xff]
    %v364 = vld [vmem:[#allocation2 + $0x58] sm:$0xff]
    %v365 = vld [vmem:[#allocation2 + $0x60] sm:$0xff]
    %v366 = vld [vmem:[#allocation2 + $0x68] sm:$0xff]
    %v367 = vld [vmem:[#allocation2 + $0x70] sm:$0xff]
    %v368 = vld [vmem:[#allocation2 + $0x78] sm:$0xff]
    %v369 = vld [vmem:[#allocation2 + $0x80] sm:$0xf]
    %v370 = vld [vmem:[#allocation2 + $0x88] sm:$0xf]
    %v371 = vld [vmem:[#allocation2 + $0x90] sm:$0xf]
    %v372 = vld [vmem:[#allocation2 + $0x98] sm:$0xf]
    %vm373 = vcmask 293888
    %v375 = vsel %vm373, %v352, 0
    %vm377 = vcmask 1043456
    %v379 = vsel %vm377, %v369, 0
    %v382 = vsel %vm377, %v370, 0
    %v385 = vsel %vm377, %v371, 0
    %v388 = vsel %vm377, %v372, 0
    %390 = vmatprep.subr.mxu0 %v354
    %391 = vmatpush1.msra.mxu0 %v353
    %392 = vmatprep.subr.mxu0 %v358
    %393 = vmatpush1.msra.mxu0 %v357
    %394 = vmatprep.subr.mxu0 %v362
    %395 = vmatpush1.msra.mxu0 %v361
    %396 = vmatprep.subr.mxu0 %v366
    %397 = vmatpush1.msra.mxu0 %v365
    %398 = vmatprep.subr.mxu0 %v382
    %399 = vmatpush1.msra.mxu0 %v379
    %400 = vmatprep.subr.mxu0 0.0
    %401 = vmatpush1.msra.mxu0 0.0
    %402 = vmatprep.subr.mxu0 0.0
    %403 = vmatpush1.msra.mxu0 0.0
    %404 = vmatprep.subr.mxu0 0.0
    %405 = vmatpush1.msra.mxu0 0.0
    %406 = vmatprep.subr.mxu0 0.0
    %407 = vmatpush1.msra.mxu0 0.0
    %408 = vmatprep.subr.mxu0 0.0
    %409 = vmatpush1.msra.mxu0 0.0
    %410 = vmatprep.subr.mxu0 0.0
    %411 = vmatpush1.msra.mxu0 0.0
    %412 = vmatprep.subr.mxu0 0.0
    %413 = vmatpush1.msra.mxu0 0.0
    %414 = vmatprep.subr.mxu0 0.0
    %415 = vmatpush1.msra.mxu0 0.0
    %416 = vmatprep.subr.mxu0 0.0
    %417 = vmatpush1.msra.mxu0 0.0
    %418 = vmatprep.subr.mxu0 0.0
    %419 = vmatpush1.msra.mxu0 0.0
    %420 = vmatprep.subr.mxu0 0.0
    %421 = vmatpush1.msra.mxu0 0.0
    %422 = vmatprep.subr.mxu0 0.0
    %423 = vmatpush1.msra.mxu0 0.0
    %424 = vmatprep.subr.mxu0 0.0
    %425 = vmatpush1.msra.mxu0 0.0
    %426 = vmatprep.subr.mxu0 0.0
    %427 = vmatpush1.msra.mxu0 0.0
    %428 = vmatprep.subr.mxu0 0.0
    %429 = vmatpush1.msra.mxu0 0.0
    %430 = vmatprep.subr.mxu0 0.0
    %431 = vmatpush1.msra.mxu0 0.0
    %432 = vmatprep.subr.mxu0 0.0
    %433 = vmatpush1.msra.mxu0 0.0
    %434 = vmatprep.subr.mxu0 0.0
    %435 = vmatpush1.msra.mxu0 0.0
    %436 = vmatprep.subr.mxu0 0.0
    %437 = vmatpush1.msra.mxu0 0.0
    %438 = vmatprep.subr.mxu0 0.0
    %439 = vmatpush1.msra.mxu0 0.0
    %440 = vmatprep.subr.mxu0 0.0
    %441 = vmatpush1.msra.mxu0 0.0
    %442 = vmatprep.subr.mxu0 0.0
    %443 = vmatpush1.msra.mxu0 0.0
    %444 = vmatprep.subr.mxu0 0.0
    %445 = vmatpush1.msra.mxu0 0.0
    %446 = vmatprep.subr.mxu0 0.0
    %447 = vmatpush1.msra.mxu0 0.0
    %448 = vmatprep.subr.mxu0 0.0
    %449 = vmatpush1.msra.mxu0 0.0
    %450 = vmatprep.subr.mxu0 0.0
    %451 = vmatpush1.msra.mxu0 0.0
    %452 = vmatprep.subr.mxu0 0.0
    %453 = vmatpush1.msra.mxu0 0.0
    %454 = vmatprep.mubr.f32.mxu0 0.0
    %455 = vmatmul.mubr.f32.gmra.mrb[0].mxu0 %v375
    %v456 = vpop.f32.mrb[0].mxu0
    %v457 = vadd.f32 0.0, %v456
    %v458 = vpop.f32.mrb[0].mxu0
    %v459 = vadd.f32 0.0, %v458
    %460 = vdwg.mxu0
    %461 = vmatprep.subr.mxu0 %v356
    %462 = vmatpush1.msra.mxu0 %v355
    %463 = vmatprep.subr.mxu0 %v360
    %464 = vmatpush1.msra.mxu0 %v359
    %465 = vmatprep.subr.mxu0 %v364
    %466 = vmatpush1.msra.mxu0 %v363
    %467 = vmatprep.subr.mxu0 %v368
    %468 = vmatpush1.msra.mxu0 %v367
    %469 = vmatprep.subr.mxu0 %v388
    %470 = vmatpush1.msra.mxu0 %v385
    %471 = vmatprep.subr.mxu0 0.0
    %472 = vmatpush1.msra.mxu0 0.0
    %473 = vmatprep.subr.mxu0 0.0
    %474 = vmatpush1.msra.mxu0 0.0
    %475 = vmatprep.subr.mxu0 0.0
    %476 = vmatpush1.msra.mxu0 0.0
    %477 = vmatprep.subr.mxu0 0.0
    %478 = vmatpush1.msra.mxu0 0.0
    %479 = vmatprep.subr.mxu0 0.0
    %480 = vmatpush1.msra.mxu0 0.0
    %481 = vmatprep.subr.mxu0 0.0
    %482 = vmatpush1.msra.mxu0 0.0
    %483 = vmatprep.subr.mxu0 0.0
    %484 = vmatpush1.msra.mxu0 0.0
    %485 = vmatprep.subr.mxu0 0.0
    %486 = vmatpush1.msra.mxu0 0.0
    %487 = vmatprep.subr.mxu0 0.0
    %488 = vmatpush1.msra.mxu0 0.0
    %489 = vmatprep.subr.mxu0 0.0
    %490 = vmatpush1.msra.mxu0 0.0
    %491 = vmatprep.subr.mxu0 0.0
    %492 = vmatpush1.msra.mxu0 0.0
    %493 = vmatprep.subr.mxu0 0.0
    %494 = vmatpush1.msra.mxu0 0.0
    %495 = vmatprep.subr.mxu0 0.0
    %496 = vmatpush1.msra.mxu0 0.0
    %497 = vmatprep.subr.mxu0 0.0
    %498 = vmatpush1.msra.mxu0 0.0
    %499 = vmatprep.subr.mxu0 0.0
    %500 = vmatpush1.msra.mxu0 0.0
    %501 = vmatprep.subr.mxu0 0.0
    %502 = vmatpush1.msra.mxu0 0.0
    %503 = vmatprep.subr.mxu0 0.0
    %504 = vmatpush1.msra.mxu0 0.0
    %505 = vmatprep.subr.mxu0 0.0
    %506 = vmatpush1.msra.mxu0 0.0
    %507 = vmatprep.subr.mxu0 0.0
    %508 = vmatpush1.msra.mxu0 0.0
    %509 = vmatprep.subr.mxu0 0.0
    %510 = vmatpush1.msra.mxu0 0.0
    %511 = vmatprep.subr.mxu0 0.0
    %512 = vmatpush1.msra.mxu0 0.0
    %513 = vmatprep.subr.mxu0 0.0
    %514 = vmatpush1.msra.mxu0 0.0
    %515 = vmatprep.subr.mxu0 0.0
    %516 = vmatpush1.msra.mxu0 0.0
    %517 = vmatprep.subr.mxu0 0.0
    %518 = vmatpush1.msra.mxu0 0.0
    %519 = vmatprep.subr.mxu0 0.0
    %520 = vmatpush1.msra.mxu0 0.0
    %521 = vmatprep.subr.mxu0 0.0
    %522 = vmatpush1.msra.mxu0 0.0
    %523 = vmatprep.subr.mxu0 0.0
    %524 = vmatpush1.msra.mxu0 0.0
    %525 = vmatprep.mubr.f32.mxu0 0.0
    %526 = vmatmul.mubr.f32.gmra.mrb[0].mxu0 %v375
    %v527 = vpop.f32.mrb[0].mxu0
    %v528 = vadd.f32 0.0, %v527
    %v529 = vpop.f32.mrb[0].mxu0
    %v530 = vadd.f32 0.0, %v529
    %531 = vdwg.mxu0
    %v532 = vsel %vm377, %v457, 0.0
    %v533 = vsel %vm377, %v459, 0.0
    %v534 = vadd.f32 %v532, %v533
    %v535 = vsel %vm377, %v528, 0.0
    %v536 = vadd.f32 %v534, %v535
    %v537 = vsel %vm377, %v530, 0.0
    %v538 = vadd.f32 %v536, %v537
    %539 = vadd.xlane.f32.xlu0 %v538
    %v540 = vpop.xlane.xlu0 %539
    %v541 = vmul.f32 %v540, 0.001953125
    %v542 = vmul.f32 %v457, %v457
    %v543 = vmul.f32 %v459, %v459
    %v544 = vmul.f32 %v528, %v528
    %v545 = vmul.f32 %v530, %v530
    %v546 = vsel %vm377, %v542, 0.0
    %v547 = vsel %vm377, %v543, 0.0
    %v548 = vadd.f32 %v546, %v547
    %v549 = vsel %vm377, %v544, 0.0
    %v550 = vadd.f32 %v548, %v549
    %v551 = vsel %vm377, %v545, 0.0
    %v552 = vadd.f32 %v550, %v551
    %553 = vadd.xlane.f32.xlu0 %v552
    %v554 = vpop.xlane.xlu0 %553
    %v555 = vmul.f32 %v554, 0.001953125
    %v556 = vmul.f32 %v541, %v541
    %v557 = vsub.f32 %v555, %v556
    %v558 = vadd.f32 %v557, 1e-05
    %v559 = vrsqrt.pop %v558
    %v560 = vmul.f32 %v559, %v125
    %v561 = vmul.f32 %v541, %v560
    %563 = vrot.lane.b32.xlu0 %v561, 1
    %v564 = vpop.permute.xlu0 %563
    %v566 = vsub.f32 %v125, %v564
    %568 = vset.pattern.permute.xlu0 0
    %569 = vperm.xlu0 %568, %v560
    %v570 = vpop.permute.xlu0 %569
    %v572 = vmul.f32 %v457, %v570
    %v573 = vmul.f32 %v459, %v570
    %v574 = vmul.f32 %v528, %v570
    %v575 = vmul.f32 %v530, %v570
    %577 = vset.pattern.permute.xlu0 1
    %578 = vperm.xlu0 %577, %v566
    %v579 = vpop.permute.xlu0 %578
    %v581 = vadd.f32 %v572, %v579
    %v582 = vadd.f32 %v573, %v579
    %v583 = vadd.f32 %v574, %v579
    %v584 = vadd.f32 %v575, %v579
    %v585 = vmax.f32 %v581, 0.0
    %v586 = vmax.f32 %v582, 0.0
    %v587 = vmax.f32 %v583, 0.0
    %v588 = vmax.f32 %v584, 0.0
    %589 = vrot.lane.b32.xlu0 %v585, 17
    %v590 = vpop.permute.xlu0 %589
    %591 = vrot.lane.b32.xlu0 %v586, 17
    %v592 = vpop.permute.xlu0 %591
    %593 = vrot.lane.b32.xlu0 %v587, 17
    %v594 = vpop.permute.xlu0 %593
    %595 = vrot.lane.b32.xlu0 %v588, 17
    %v596 = vpop.permute.xlu0 %595
    %v597 = vsel %vm140, %v594, %v596
    %v598 = vsel %vm140, %v592, %v594
    %v599 = vsel %vm140, %v590, %v592
    %v600 = vsel %vm140, %v596, %v590
    %v601 = vmul.f32 %v600, %v73
    %v602 = vmul.f32 %v599, %v74
    %v603 = vmul.f32 %v598, %v75
    %v604 = vmul.f32 %v597, %v76
    %605 = vst [vmem:[#allocation2] sm:$0xf] %v601
    %606 = vst [vmem:[#allocation2 + $0x8] sm:$0xf] %v602
    %607 = vst [vmem:[#allocation2 + $0x10] sm:$0xf] %v603
    %608 = vst [vmem:[#allocation2 + $0x18] sm:$0xf] %v604
    %609 = vrot.lane.b32.xlu0 %v585, 16
    %v610 = vpop.permute.xlu0 %609
    %611 = vrot.lane.b32.xlu0 %v586, 16
    %v612 = vpop.permute.xlu0 %611
    %613 = vrot.lane.b32.xlu0 %v587, 16
    %v614 = vpop.permute.xlu0 %613
    %615 = vrot.lane.b32.xlu0 %v588, 16
    %v616 = vpop.permute.xlu0 %615
    %v617 = vsel %vm161, %v614, %v616
    %v618 = vsel %vm161, %v612, %v614
    %v619 = vsel %vm161, %v610, %v612
    %v620 = vsel %vm161, %v616, %v610
    %v621 = vmul.f32 %v620, %v77
    %v622 = vmul.f32 %v619, %v78
    %v623 = vmul.f32 %v618, %v79
    %v624 = vmul.f32 %v617, %v80
    %v629 = vrot.slane %v621, 4
    %v630 = vrot.slane %v622, 4
    %v631 = vrot.slane %v623, 4
    %v632 = vrot.slane %v624, 4
    %637 = vst [vmem:[#allocation2] sm:$0xf0] %v629
    %638 = vst [vmem:[#allocation2 + $0x8] sm:$0xf0] %v630
    %639 = vst [vmem:[#allocation2 + $0x10] sm:$0xf0] %v631
    %640 = vst [vmem:[#allocation2 + $0x18] sm:$0xf0] %v632
    %641 = vrot.lane.b32.xlu0 %v585, 15
    %v642 = vpop.permute.xlu0 %641
    %643 = vrot.lane.b32.xlu0 %v586, 15
    %v644 = vpop.permute.xlu0 %643
    %645 = vrot.lane.b32.xlu0 %v587, 15
    %v646 = vpop.permute.xlu0 %645
    %647 = vrot.lane.b32.xlu0 %v588, 15
    %v648 = vpop.permute.xlu0 %647
    %v649 = vsel %vm194, %v646, %v648
    %v650 = vsel %vm194, %v644, %v646
    %v651 = vsel %vm194, %v642, %v644
    %v652 = vsel %vm194, %v648, %v642
    %v653 = vmul.f32 %v652, %v89
    %v654 = vmul.f32 %v651, %v90
    %v655 = vmul.f32 %v650, %v91
    %v656 = vmul.f32 %v649, %v92
    %657 = vst [vmem:[#allocation2 + $0x20] sm:$0xf] %v653
    %658 = vst [vmem:[#allocation2 + $0x28] sm:$0xf] %v654
    %659 = vst [vmem:[#allocation2 + $0x30] sm:$0xf] %v655
    %660 = vst [vmem:[#allocation2 + $0x38] sm:$0xf] %v656
    %661 = vrot.lane.b32.xlu0 %v585, 1
    %v662 = vpop.permute.xlu0 %661
    %663 = vrot.lane.b32.xlu0 %v586, 1
    %v664 = vpop.permute.xlu0 %663
    %665 = vrot.lane.b32.xlu0 %v587, 1
    %v666 = vpop.permute.xlu0 %665
    %667 = vrot.lane.b32.xlu0 %v588, 1
    %v668 = vpop.permute.xlu0 %667
    %v669 = vsel %vm215, %v666, %v668
    %v670 = vsel %vm215, %v664, %v666
    %v671 = vsel %vm215, %v662, %v664
    %v672 = vsel %vm215, %v668, %v662
    %v673 = vmul.f32 %v672, %v93
    %v674 = vmul.f32 %v671, %v94
    %v675 = vmul.f32 %v670, %v95
    %v676 = vmul.f32 %v669, %v96
    %v681 = vrot.slane %v673, 4
    %v682 = vrot.slane %v674, 4
    %v683 = vrot.slane %v675, 4
    %v684 = vrot.slane %v676, 4
    %689 = vst [vmem:[#allocation2 + $0x20] sm:$0xf0] %v681
    %690 = vst [vmem:[#allocation2 + $0x28] sm:$0xf0] %v682
    %691 = vst [vmem:[#allocation2 + $0x30] sm:$0xf0] %v683
    %692 = vst [vmem:[#allocation2 + $0x38] sm:$0xf0] %v684
    %693 = vst [vmem:[#allocation2 + $0x40] sm:$0xf] %v585
    %694 = vst [vmem:[#allocation2 + $0x48] sm:$0xf] %v586
    %695 = vst [vmem:[#allocation2 + $0x50] sm:$0xf] %v587
    %696 = vst [vmem:[#allocation2 + $0x58] sm:$0xf] %v588
    %697 = vrot.lane.b32.xlu0 %v585, 127
    %v698 = vpop.permute.xlu0 %697
    %699 = vrot.lane.b32.xlu0 %v586, 127
    %v700 = vpop.permute.xlu0 %699
    %701 = vrot.lane.b32.xlu0 %v587, 127
    %v702 = vpop.permute.xlu0 %701
    %703 = vrot.lane.b32.xlu0 %v588, 127
    %v704 = vpop.permute.xlu0 %703
    %v705 = vsel %vm252, %v702, %v704
    %v706 = vsel %vm252, %v700, %v702
    %v707 = vsel %vm252, %v698, %v700
    %v708 = vsel %vm252, %v704, %v698
    %v709 = vmul.f32 %v707, %v97
    %v710 = vmul.f32 %v706, %v98
    %v711 = vmul.f32 %v705, %v99
    %v712 = vmul.f32 %v708, %v100
    %v717 = vrot.slane %v709, 4
    %v718 = vrot.slane %v710, 4
    %v719 = vrot.slane %v711, 4
    %v720 = vrot.slane %v712, 4
    %725 = vst [vmem:[#allocation2 + $0x40] sm:$0xf0] %v717
    %726 = vst [vmem:[#allocation2 + $0x48] sm:$0xf0] %v718
    %727 = vst [vmem:[#allocation2 + $0x50] sm:$0xf0] %v719
    %728 = vst [vmem:[#allocation2 + $0x58] sm:$0xf0] %v720
    %729 = vrot.lane.b32.xlu0 %v585, 113
    %v730 = vpop.permute.xlu0 %729
    %731 = vrot.lane.b32.xlu0 %v586, 113
    %v732 = vpop.permute.xlu0 %731
    %733 = vrot.lane.b32.xlu0 %v587, 113
    %v734 = vpop.permute.xlu0 %733
    %735 = vrot.lane.b32.xlu0 %v588, 113
    %v736 = vpop.permute.xlu0 %735
    %v737 = vsel %vm285, %v734, %v736
    %v738 = vsel %vm285, %v732, %v734
    %v739 = vsel %vm285, %v730, %v732
    %v740 = vsel %vm285, %v736, %v730
    %v741 = vmul.f32 %v739, %v109
    %v742 = vmul.f32 %v738, %v110
    %v743 = vmul.f32 %v737, %v111
    %v744 = vmul.f32 %v740, %v112
    %745 = vst [vmem:[#allocation2 + $0x60] sm:$0xf] %v741
    %746 = vst [vmem:[#allocation2 + $0x68] sm:$0xf] %v742
    %747 = vst [vmem:[#allocation2 + $0x70] sm:$0xf] %v743
    %748 = vst [vmem:[#allocation2 + $0x78] sm:$0xf] %v744
    %749 = vrot.lane.b32.xlu0 %v585, 112
    %v750 = vpop.permute.xlu0 %749
    %751 = vrot.lane.b32.xlu0 %v586, 112
    %v752 = vpop.permute.xlu0 %751
    %753 = vrot.lane.b32.xlu0 %v587, 112
    %v754 = vpop.permute.xlu0 %753
    %755 = vrot.lane.b32.xlu0 %v588, 112
    %v756 = vpop.permute.xlu0 %755
    %v757 = vsel %vm306, %v754, %v756
    %v758 = vsel %vm306, %v752, %v754
    %v759 = vsel %vm306, %v750, %v752
    %v760 = vsel %vm306, %v756, %v750
    %v761 = vmul.f32 %v759, %v113
    %v762 = vmul.f32 %v758, %v114
    %v763 = vmul.f32 %v757, %v115
    %v764 = vmul.f32 %v760, %v116
    %v769 = vrot.slane %v761, 4
    %v770 = vrot.slane %v762, 4
    %v771 = vrot.slane %v763, 4
    %v772 = vrot.slane %v764, 4
    %777 = vst [vmem:[#allocation2 + $0x60] sm:$0xf0] %v769
    %778 = vst [vmem:[#allocation2 + $0x68] sm:$0xf0] %v770
    %779 = vst [vmem:[#allocation2 + $0x70] sm:$0xf0] %v771
    %780 = vst [vmem:[#allocation2 + $0x78] sm:$0xf0] %v772
    %781 = vrot.lane.b32.xlu0 %v585, 111
    %v782 = vpop.permute.xlu0 %781
    %783 = vrot.lane.b32.xlu0 %v586, 111
    %v784 = vpop.permute.xlu0 %783
    %785 = vrot.lane.b32.xlu0 %v587, 111
    %v786 = vpop.permute.xlu0 %785
    %787 = vrot.lane.b32.xlu0 %v588, 111
    %v788 = vpop.permute.xlu0 %787
    %v789 = vsel %vm339, %v786, %v788
    %v790 = vsel %vm339, %v784, %v786
    %v791 = vsel %vm339, %v782, %v784
    %v792 = vsel %vm339, %v788, %v782
    %v793 = vmul.f32 %v791, %v121
    %v794 = vmul.f32 %v790, %v122
    %v795 = vmul.f32 %v789, %v123
    %v796 = vmul.f32 %v792, %v124
    %797 = vst [vmem:[#allocation2 + $0x80] sm:$0xf] %v793
    %798 = vst [vmem:[#allocation2 + $0x88] sm:$0xf] %v794
    %799 = vst [vmem:[#allocation2 + $0x90] sm:$0xf] %v795
    %800 = vst [vmem:[#allocation2 + $0x98] sm:$0xf] %v796
    %v801 = vld [vmem:[%s2] sm:$0xf]
    %v802 = vld [vmem:[#allocation2] sm:$0xff]
    %v803 = vld [vmem:[#allocation2 + $0x8] sm:$0xff]
    %v804 = vld [vmem:[#allocation2 + $0x10] sm:$0xff]
    %v805 = vld [vmem:[#allocation2 + $0x18] sm:$0xff]
    %v806 = vld [vmem:[#allocation2 + $0x20] sm:$0xff]
    %v807 = vld [vmem:[#allocation2 + $0x28] sm:$0xff]
    %v808 = vld [vmem:[#allocation2 + $0x30] sm:$0xff]
    %v809 = vld [vmem:[#allocation2 + $0x38] sm:$0xff]
    %v810 = vld [vmem:[#allocation2 + $0x40] sm:$0xff]
    %v811 = vld [vmem:[#allocation2 + $0x48] sm:$0xff]
    %v812 = vld [vmem:[#allocation2 + $0x50] sm:$0xff]
    %v813 = vld [vmem:[#allocation2 + $0x58] sm:$0xff]
    %v814 = vld [vmem:[#allocation2 + $0x60] sm:$0xff]
    %v815 = vld [vmem:[#allocation2 + $0x68] sm:$0xff]
    %v816 = vld [vmem:[#allocation2 + $0x70] sm:$0xff]
    %v817 = vld [vmem:[#allocation2 + $0x78] sm:$0xff]
    %v818 = vld [vmem:[#allocation2 + $0x80] sm:$0xf]
    %v819 = vld [vmem:[#allocation2 + $0x88] sm:$0xf]
    %v820 = vld [vmem:[#allocation2 + $0x90] sm:$0xf]
    %v821 = vld [vmem:[#allocation2 + $0x98] sm:$0xf]
    %v823 = vsel %vm373, %v801, 0
    %v826 = vsel %vm377, %v818, 0
    %v829 = vsel %vm377, %v819, 0
    %v832 = vsel %vm377, %v820, 0
    %v835 = vsel %vm377, %v821, 0
    %837 = vmatprep.subr.mxu0 %v803
    %838 = vmatpush1.msra.mxu0 %v802
    %839 = vmatprep.subr.mxu0 %v807
    %840 = vmatpush1.msra.mxu0 %v806
    %841 = vmatprep.subr.mxu0 %v811
    %842 = vmatpush1.msra.mxu0 %v810
    %843 = vmatprep.subr.mxu0 %v815
    %844 = vmatpush1.msra.mxu0 %v814
    %845 = vmatprep.subr.mxu0 %v829
    %846 = vmatpush1.msra.mxu0 %v826
    %847 = vmatprep.subr.mxu0 0.0
    %848 = vmatpush1.msra.mxu0 0.0
    %849 = vmatprep.subr.mxu0 0.0
    %850 = vmatpush1.msra.mxu0 0.0
    %851 = vmatprep.subr.mxu0 0.0
    %852 = vmatpush1.msra.mxu0 0.0
    %853 = vmatprep.subr.mxu0 0.0
    %854 = vmatpush1.msra.mxu0 0.0
    %855 = vmatprep.subr.mxu0 0.0
    %856 = vmatpush1.msra.mxu0 0.0
    %857 = vmatprep.subr.mxu0 0.0
    %858 = vmatpush1.msra.mxu0 0.0
    %859 = vmatprep.subr.mxu0 0.0
    %860 = vmatpush1.msra.mxu0 0.0
    %861 = vmatprep.subr.mxu0 0.0
    %862 = vmatpush1.msra.mxu0 0.0
    %863 = vmatprep.subr.mxu0 0.0
    %864 = vmatpush1.msra.mxu0 0.0
    %865 = vmatprep.subr.mxu0 0.0
    %866 = vmatpush1.msra.mxu0 0.0
    %867 = vmatprep.subr.mxu0 0.0
    %868 = vmatpush1.msra.mxu0 0.0
    %869 = vmatprep.subr.mxu0 0.0
    %870 = vmatpush1.msra.mxu0 0.0
    %871 = vmatprep.subr.mxu0 0.0
    %872 = vmatpush1.msra.mxu0 0.0
    %873 = vmatprep.subr.mxu0 0.0
    %874 = vmatpush1.msra.mxu0 0.0
    %875 = vmatprep.subr.mxu0 0.0
    %876 = vmatpush1.msra.mxu0 0.0
    %877 = vmatprep.subr.mxu0 0.0
    %878 = vmatpush1.msra.mxu0 0.0
    %879 = vmatprep.subr.mxu0 0.0
    %880 = vmatpush1.msra.mxu0 0.0
    %881 = vmatprep.subr.mxu0 0.0
    %882 = vmatpush1.msra.mxu0 0.0
    %883 = vmatprep.subr.mxu0 0.0
    %884 = vmatpush1.msra.mxu0 0.0
    %885 = vmatprep.subr.mxu0 0.0
    %886 = vmatpush1.msra.mxu0 0.0
    %887 = vmatprep.subr.mxu0 0.0
    %888 = vmatpush1.msra.mxu0 0.0
    %889 = vmatprep.subr.mxu0 0.0
    %890 = vmatpush1.msra.mxu0 0.0
    %891 = vmatprep.subr.mxu0 0.0
    %892 = vmatpush1.msra.mxu0 0.0
    %893 = vmatprep.subr.mxu0 0.0
    %894 = vmatpush1.msra.mxu0 0.0
    %895 = vmatprep.subr.mxu0 0.0
    %896 = vmatpush1.msra.mxu0 0.0
    %897 = vmatprep.subr.mxu0 0.0
    %898 = vmatpush1.msra.mxu0 0.0
    %899 = vmatprep.subr.mxu0 0.0
    %900 = vmatpush1.msra.mxu0 0.0
    %901 = vmatprep.mubr.f32.mxu0 0.0
    %902 = vmatmul.mubr.f32.gmra.mrb[0].mxu0 %v823
    %v903 = vpop.f32.mrb[0].mxu0
    %v904 = vadd.f32 0.0, %v903
    %v905 = vpop.f32.mrb[0].mxu0
    %v906 = vadd.f32 0.0, %v905
    %907 = vdwg.mxu0
    %908 = vmatprep.subr.mxu0 %v805
    %909 = vmatpush1.msra.mxu0 %v804
    %910 = vmatprep.subr.mxu0 %v809
    %911 = vmatpush1.msra.mxu0 %v808
    %912 = vmatprep.subr.mxu0 %v813
    %913 = vmatpush1.msra.mxu0 %v812
    %914 = vmatprep.subr.mxu0 %v817
    %915 = vmatpush1.msra.mxu0 %v816
    %916 = vmatprep.subr.mxu0 %v835
    %917 = vmatpush1.msra.mxu0 %v832
    %918 = vmatprep.subr.mxu0 0.0
    %919 = vmatpush1.msra.mxu0 0.0
    %920 = vmatprep.subr.mxu0 0.0
    %921 = vmatpush1.msra.mxu0 0.0
    %922 = vmatprep.subr.mxu0 0.0
    %923 = vmatpush1.msra.mxu0 0.0
    %924 = vmatprep.subr.mxu0 0.0
    %925 = vmatpush1.msra.mxu0 0.0
    %926 = vmatprep.subr.mxu0 0.0
    %927 = vmatpush1.msra.mxu0 0.0
    %928 = vmatprep.subr.mxu0 0.0
    %929 = vmatpush1.msra.mxu0 0.0
    %930 = vmatprep.subr.mxu0 0.0
    %931 = vmatpush1.msra.mxu0 0.0
    %932 = vmatprep.subr.mxu0 0.0
    %933 = vmatpush1.msra.mxu0 0.0
    %934 = vmatprep.subr.mxu0 0.0
    %935 = vmatpush1.msra.mxu0 0.0
    %936 = vmatprep.subr.mxu0 0.0
    %937 = vmatpush1.msra.mxu0 0.0
    %938 = vmatprep.subr.mxu0 0.0
    %939 = vmatpush1.msra.mxu0 0.0
    %940 = vmatprep.subr.mxu0 0.0
    %941 = vmatpush1.msra.mxu0 0.0
    %942 = vmatprep.subr.mxu0 0.0
    %943 = vmatpush1.msra.mxu0 0.0
    %944 = vmatprep.subr.mxu0 0.0
    %945 = vmatpush1.msra.mxu0 0.0
    %946 = vmatprep.subr.mxu0 0.0
    %947 = vmatpush1.msra.mxu0 0.0
    %948 = vmatprep.subr.mxu0 0.0
    %949 = vmatpush1.msra.mxu0 0.0
    %950 = vmatprep.subr.mxu0 0.0
    %951 = vmatpush1.msra.mxu0 0.0
    %952 = vmatprep.subr.mxu0 0.0
    %953 = vmatpush1.msra.mxu0 0.0
    %954 = vmatprep.subr.mxu0 0.0
    %955 = vmatpush1.msra.mxu0 0.0
    %956 = vmatprep.subr.mxu0 0.0
    %957 = vmatpush1.msra.mxu0 0.0
    %958 = vmatprep.subr.mxu0 0.0
    %959 = vmatpush1.msra.mxu0 0.0
    %960 = vmatprep.subr.mxu0 0.0
    %961 = vmatpush1.msra.mxu0 0.0
    %962 = vmatprep.subr.mxu0 0.0
    %963 = vmatpush1.msra.mxu0 0.0
    %964 = vmatprep.subr.mxu0 0.0
    %965 = vmatpush1.msra.mxu0 0.0
    %966 = vmatprep.subr.mxu0 0.0
    %967 = vmatpush1.msra.mxu0 0.0
    %968 = vmatprep.subr.mxu0 0.0
    %969 = vmatpush1.msra.mxu0 0.0
    %970 = vmatprep.subr.mxu0 0.0
    %971 = vmatpush1.msra.mxu0 0.0
    %972 = vmatprep.mubr.f32.mxu0 0.0
    %973 = vmatmul.mubr.f32.gmra.mrb[0].mxu0 %v823
    %v974 = vpop.f32.mrb[0].mxu0
    %v975 = vadd.f32 0.0, %v974
    %v976 = vpop.f32.mrb[0].mxu0
    %v977 = vadd.f32 0.0, %v976
    %978 = vdwg.mxu0
    %v979 = vsel %vm377, %v904, 0.0
    %v980 = vsel %vm377, %v906, 0.0
    %v981 = vadd.f32 %v979, %v980
    %v982 = vsel %vm377, %v975, 0.0
    %v983 = vadd.f32 %v981, %v982
    %v984 = vsel %vm377, %v977, 0.0
    %v985 = vadd.f32 %v983, %v984
    %986 = vadd.xlane.f32.xlu0 %v985
    %v987 = vpop.xlane.xlu0 %986
    %v988 = vmul.f32 %v987, 0.001953125
    %v989 = vmul.f32 %v904, %v904
    %v990 = vmul.f32 %v906, %v906
    %v991 = vmul.f32 %v975, %v975
    %v992 = vmul.f32 %v977, %v977
    %v993 = vsel %vm377, %v989, 0.0
    %v994 = vsel %vm377, %v990, 0.0
    %v995 = vadd.f32 %v993, %v994
    %v996 = vsel %vm377, %v991, 0.0
    %v997 = vadd.f32 %v995, %v996
    %v998 = vsel %vm377, %v992, 0.0
    %v999 = vadd.f32 %v997, %v998
    %1000 = vadd.xlane.f32.xlu0 %v999
    %v1001 = vpop.xlane.xlu0 %1000
    %v1002 = vmul.f32 %v1001, 0.001953125
    %v1003 = vmul.f32 %v988, %v988
    %v1004 = vsub.f32 %v1002, %v1003
    %v1005 = vadd.f32 %v1004, 1e-05
    %v1006 = vrsqrt.pop %v1005
    %v1007 = vmul.f32 %v1006, %v125
    %v1008 = vmul.f32 %v988, %v1007
    %1010 = vrot.lane.b32.xlu0 %v1008, 1
    %v1011 = vpop.permute.xlu0 %1010
    %v1013 = vsub.f32 %v125, %v1011
    %1015 = vset.pattern.permute.xlu0 2
    %1016 = vperm.xlu0 %1015, %v1007
    %v1017 = vpop.permute.xlu0 %1016
    %v1019 = vmul.f32 %v904, %v1017
    %v1020 = vmul.f32 %v906, %v1017
    %v1021 = vmul.f32 %v975, %v1017
    %v1022 = vmul.f32 %v977, %v1017
    %1024 = vset.pattern.permute.xlu0 3
    %1025 = vperm.xlu0 %1024, %v1013
    %v1026 = vpop.permute.xlu0 %1025
    %v1028 = vadd.f32 %v1019, %v1026
    %v1029 = vadd.f32 %v1020, %v1026
    %v1030 = vadd.f32 %v1021, %v1026
    %v1031 = vadd.f32 %v1022, %v1026
    %v1032 = vadd.f32 %v1028, %v42
    %v1033 = vadd.f32 %v1029, %v128
    %v1034 = vadd.f32 %v1030, %v43
    %v1035 = vadd.f32 %v1031, %v129
    %v1036 = vmax.f32 %v1032, 0.0
    %v1037 = vmax.f32 %v1033, 0.0
    %v1038 = vmax.f32 %v1034, 0.0
    %v1039 = vmax.f32 %v1035, 0.0
    %v1044 = vcombine.low %v1036, %v1037
    %v1045 = vcombine.low %v1038, %v1039
    %1048 = vst [vmem:[#allocation8] sm:$0xff] %v1044
    %1049 = vst [vmem:[#allocation8 + $0x8] sm:$0xff] %v1045
    // Predicated region
    $region26: #{tpu_custom_call.1} parent=1 // pred_check
      _
    $region27: #{tpu_custom_call.1} parent=1 // pred_check_branch
      %1051 = sbr.rel (0) target = $region29
    $region28: #{tpu_custom_call.1} parent=1 // pred_region
      %s1053 = ssub.s32 256, 256
      %1054 = vsyncadd [#allocation5], %s1053
      %s1056 = sshll.u32 [#allocation8], 4
      %s1057 = int_to_ptr.vmem [resolvable:$true] %s1056
      %1059 = dma.vmem_to_hbm [thread:$0]  %s1057, 256, %s4, [#allocation5]
    $region29: #{tpu_custom_call.1} parent=1 // pred_fallthru
      _
    // Predicated region
    $region30: #{tpu_custom_call.1} parent=1 // pred_check
      _
    $region31: #{tpu_custom_call.1} parent=1 // pred_check_branch
      %1061 = sbr.rel (0) target = $region33
    $region32: #{tpu_custom_call.1} parent=1 // pred_region
      %1062 = dma.done [#allocation5], 256
    $region33: #{tpu_custom_call.1} parent=1 // pred_fallthru
      _
    %1063 = vsyncpa [#allocation4], 1
    %1064 = vsyncpa [#allocation7], 1
    %1065 = vsyncpa [#allocation5], 1

</llo_original>
